<compile_context>
chip_gen: v7x
topology: tpu7x:2x2x1
jax: 0.10.0
libtpu: 0.0.40
codegen_flags: <defaults>
</compile_context>

<pallas_src>
import numpy as np
import jax
import jax.numpy as jnp
from jax.experimental import pallas as pl
from jax.experimental.pallas import tpu as pltpu


def _round_up(x, m):
    return ((x + m - 1) // m) * m


def make_fsq(levels, *, max_block_rows=1024):
    """Returns fsq_forward(z: [B,S,D]) -> (codes f32 [B,S,D], indices i32 [B,S])."""
    levels = [int(l) for l in levels]
    d = len(levels)
    levels_np = np.asarray(levels, dtype=np.int64)
    codebook_size = int(np.prod(levels_np))
    # f32 MXU accumulation of basis-weighted digits is exact only below 2^24.
    assert codebook_size < (1 << 24), "codebook too large for exact f32 index reduce"

    # Same constant math as the PyTorch module (note: module uses .tan()).
    eps = 0.001
    half_l_np = (levels_np - 1).astype(np.float32) * (1.0 - eps) / 2.0
    offset_np = np.where(levels_np % 2 == 0, 0.5, 0.0).astype(np.float32)
    shift_np = np.tan(offset_np / half_l_np).astype(np.float32)
    half_w_np = (levels_np // 2).astype(np.float32)
    inv_half_w_np = (1.0 / half_w_np).astype(np.float32)
    basis_np = np.cumprod(np.asarray([1] + levels[:-1], dtype=np.int64))

    half_l_vals = [float(v) for v in half_l_np]
    offset_vals = [float(v) for v in offset_np]
    shift_vals = [float(v) for v in shift_np]
    half_w_vals = [float(v) for v in half_w_np]
    inv_half_w_vals = [float(v) for v in inv_half_w_np]
    basis_vals = [float(v) for v in basis_np]

    groups = max(1, 128 // d)   # original rows packed into one lane row
    w = groups * d              # packed lane width (128 for d=4)
    pow2 = (d & (d - 1)) == 0

    def _pos(idx):
        return (idx & (d - 1)) if pow2 else (idx % d)

    def _fsq_kernel(z_ref, codes_ref, idx_ref):
        # z_ref: (tn, w).  Each consecutive group of d lanes is one original
        # row's feature vector.
        lane = jax.lax.broadcasted_iota(jnp.int32, (1, w), 1)
        pos = _pos(lane)

        def lane_const(vals):
            # (1, w) constant with vals[l % d] in lane l, built from scalar
            # immediates (no VMEM input / DMA stream).
            out = jnp.full((1, w), vals[0], dtype=jnp.float32)
            for k in range(1, d):
                out = jnp.where(pos == k, jnp.float32(vals[k]), out)
            return out

        half_l = lane_const(half_l_vals)
        offset = lane_const(offset_vals)
        shift = lane_const(shift_vals)
        half_w = lane_const(half_w_vals)
        inv_half_w = lane_const(inv_half_w_vals)

        z = z_ref[...].astype(jnp.float32)
        # bound(): (z + shift).tanh() * half_l - offset
        bounded = jnp.tanh(z + shift) * half_l - offset
        # round_ste forward == round (half-to-even, same as torch.round)
        q = jnp.round(bounded)
        # codes = quantized / half_width  (reciprocal multiply; lane-dense store)
        codes_ref[...] = (q * inv_half_w).astype(codes_ref.dtype)

        # Index reduce + lane compaction on the otherwise-idle MXU:
        #   W[l, g] = basis[l % d] if l // d == g else 0
        row = jax.lax.broadcasted_iota(jnp.int32, (w, groups), 0)
        col = jax.lax.broadcasted_iota(jnp.int32, (w, groups), 1)
        rpos = _pos(row)
        basis_rows = jnp.full((w, groups), basis_vals[0], dtype=jnp.float32)
        for k in range(1, d):
            basis_rows = jnp.where(rpos == k, jnp.float32(basis_vals[k]), basis_rows)
        rgrp = (row >> int(round(np.log2(d)))) if pow2 else (row // d)
        sel = jnp.where(rgrp == col, basis_rows, jnp.float32(0.0))

        zhat = q + half_w  # integer-valued f32 in [0, level-1]
        idx_f = jnp.dot(zhat, sel, preferred_element_type=jnp.float32)
        idx_ref[...] = idx_f.astype(jnp.int32)

    def fsq_forward(z):
        """z: [B, S, D] (f32 or bf16) -> (codes [B,S,D] f32, indices [B,S] i32)."""
        B, S, D = z.shape
        assert D == d, f"expected dim {d}, got {D}"
        N = B * S
        if z.dtype not in (jnp.float32, jnp.bfloat16):
            z = z.astype(jnp.float32)
        zf = z.reshape(N, D)

        # Pack rows into 128-wide lanes.  Only pad up to `groups` alignment
        # (<= groups-1 rows); the tile-size remainder is handled by Pallas's
        # partial-last-block masking instead of a full-array jnp.pad copy.
        np_raw = pl.cdiv(N, groups)
        n_rows_pack = np_raw * groups
        if n_rows_pack != N:
            zf = jnp.pad(zf, ((0, n_rows_pack - N), (0, 0)))
        z_pack = zf.reshape(np_raw, w)          # free, contiguous reshape

        # >=4 grid steps when possible so v7x megacore can shard; tile rows a
        # multiple of 16 (covers bf16 sublane tiling too), capped at 1024.
        tn = min(max_block_rows, _round_up(pl.cdiv(np_raw, 4), 16))
        if np_raw <= tn:
            tn = np_raw                          # single full-array block
        grid = (pl.cdiv(np_raw, tn),)

        in_bytes = zf.dtype.itemsize
        cost = pl.CostEstimate(
            flops=np_raw * w * (6 + 2 * groups),
            transcendentals=np_raw * w,                              # one tanh/elem
            bytes_accessed=np_raw * (w * (in_bytes + 4) + groups * 4),
        )

        codes_pack, idx_pack = pl.pallas_call(
            _fsq_kernel,
            out_shape=(
                jax.ShapeDtypeStruct((np_raw, w), jnp.float32),
                jax.ShapeDtypeStruct((np_raw, groups), jnp.int32),
            ),
            grid=grid,
            in_specs=[pl.BlockSpec((tn, w), lambda i: (i, 0))],
            out_specs=(
                pl.BlockSpec((tn, w), lambda i: (i, 0)),
                pl.BlockSpec((tn, groups), lambda i: (i, 0)),
            ),
            compiler_params=pltpu.CompilerParams(
                dimension_semantics=("parallel",)),
            cost_estimate=cost,
        )(z_pack)

        codes = codes_pack.reshape(n_rows_pack, D)
        idx = idx_pack.reshape(n_rows_pack)
        if n_rows_pack != N:                      # only when N % groups != 0
            codes = codes[:N]
            idx = idx[:N]
        return codes.reshape(B, S, D), idx.reshape(B, S)

    return fsq_forward


def _reference(z, levels):
    # pure-JAX reference of the PyTorch forward (num_codebooks=1)
    levels_np = np.asarray(levels, dtype=np.int32)
    eps = 0.001
    half_l = (levels_np - 1).astype(np.float32) * (1.0 - eps) / 2.0
    offset = np.where(levels_np % 2 == 0, 0.5, 0.0).astype(np.float32)
    shift = np.tan(offset / half_l).astype(np.float32)
    half_width = (levels_np // 2).astype(np.float32)
    basis = np.cumprod(np.asarray([1] + list(levels[:-1]), dtype=np.int64)).astype(np.float32)

    bounded = jnp.tanh(z.astype(jnp.float32) + shift) * half_l - offset
    q = jnp.round(bounded)
    codes = q / half_width
    zhat = codes * half_width + half_width
    indices = jnp.sum(zhat * basis, axis=-1).astype(jnp.int32)
    return codes, indices


if __name__ == "__main__":
    levels = [8, 5, 5, 5]          # codebook_dim = dim = 4, codebook_size = 1000
    fsq = jax.jit(make_fsq(levels))

    key = jax.random.PRNGKey(0)

    # Primary small shape consistent with the module's forward.
    B, S, D = 2, 8, len(levels)
    z = jax.random.normal(key, (B, S, D), dtype=jnp.float32)
    codes, indices = fsq(z)
    jax.block_until_ready((codes, indices))

    ref_codes, ref_indices = _reference(z, levels)
    assert codes.shape == (B, S, D) and codes.dtype == jnp.float32
    assert indices.shape == (B, S) and indices.dtype == jnp.int32
    np.testing.assert_allclose(np.asarray(codes), np.asarray(ref_codes),
                               rtol=1e-5, atol=1e-5)
    np.testing.assert_array_equal(np.asarray(indices), np.asarray(ref_indices))

    # Second shape exercising the multi-block grid + partial last block path.
    B2, S2 = 2, 300
    z2 = jax.random.normal(jax.random.PRNGKey(1), (B2, S2, D), dtype=jnp.float32)
    codes2, indices2 = fsq(z2)
    jax.block_until_ready((codes2, indices2))
    ref_codes2, ref_indices2 = _reference(z2, levels)
    np.testing.assert_allclose(np.asarray(codes2), np.asarray(ref_codes2),
                               rtol=1e-5, atol=1e-5)
    np.testing.assert_array_equal(np.asarray(indices2), np.asarray(ref_indices2))

    print("KERNEL_OK")
</pallas_src>

<mosaic_0001>
module attributes {stable_mosaic.version = 11 : i64} {
  func.func @_fsq_kernel(%arg0: i32, %arg1: memref<1x128xf32, #tpu.memory_space<vmem>>, %arg2: memref<1x128xf32, #tpu.memory_space<vmem>>, %arg3: memref<1x32xi32, #tpu.memory_space<vmem>>) attributes {dimension_semantics = [#tpu.dimension_semantics<parallel>], iteration_bounds = array<i64: 1>, scalar_prefetch = 0 : i64, scratch_operands = 0 : i64, tpu.core_type = #tpu.core_type<tc>, window_params = [{transform_indices = @transform_0, window_bounds = array<i64: 1, 128>}, {transform_indices = @transform_1, window_bounds = array<i64: 1, 128>}, {transform_indices = @transform_2, window_bounds = array<i64: 1, 32>}]} {
    %0 = tpu.iota {dimensions = array<i32: 1>} : vector<1x128xi32>
    %c3_i32 = arith.constant 3 : i32
    %1 = vector.broadcast %c3_i32 : i32 to vector<1x128xi32>
    %2 = arith.andi %0, %1 : vector<1x128xi32>
    %cst = arith.constant 3.496500e+00 : f32
    %3 = vector.broadcast %cst : f32 to vector<1x128xf32>
    %c1_i32 = arith.constant 1 : i32
    %4 = vector.broadcast %c1_i32 : i32 to vector<1x128xi32>
    %5 = arith.cmpi eq, %2, %4 : vector<1x128xi32>
    %cst_0 = arith.constant 1.998000e+00 : f32
    %6 = vector.broadcast %cst_0 : f32 to vector<1x128xf32>
    %7 = arith.select %5, %6, %3 : vector<1x128xi1>, vector<1x128xf32>
    %c2_i32 = arith.constant 2 : i32
    %8 = vector.broadcast %c2_i32 : i32 to vector<1x128xi32>
    %9 = arith.cmpi eq, %2, %8 : vector<1x128xi32>
    %cst_1 = arith.constant 1.998000e+00 : f32
    %10 = vector.broadcast %cst_1 : f32 to vector<1x128xf32>
    %11 = arith.select %9, %10, %7 : vector<1x128xi1>, vector<1x128xf32>
    %c3_i32_2 = arith.constant 3 : i32
    %12 = vector.broadcast %c3_i32_2 : i32 to vector<1x128xi32>
    %13 = arith.cmpi eq, %2, %12 : vector<1x128xi32>
    %cst_3 = arith.constant 1.998000e+00 : f32
    %14 = vector.broadcast %cst_3 : f32 to vector<1x128xf32>
    %15 = arith.select %13, %14, %11 : vector<1x128xi1>, vector<1x128xf32>
    %cst_4 = arith.constant 5.000000e-01 : f32
    %16 = vector.broadcast %cst_4 : f32 to vector<1x128xf32>
    %c1_i32_5 = arith.constant 1 : i32
    %17 = vector.broadcast %c1_i32_5 : i32 to vector<1x128xi32>
    %18 = arith.cmpi eq, %2, %17 : vector<1x128xi32>
    %cst_6 = arith.constant 0.000000e+00 : f32
    %19 = vector.broadcast %cst_6 : f32 to vector<1x128xf32>
    %20 = arith.select %18, %19, %16 : vector<1x128xi1>, vector<1x128xf32>
    %c2_i32_7 = arith.constant 2 : i32
    %21 = vector.broadcast %c2_i32_7 : i32 to vector<1x128xi32>
    %22 = arith.cmpi eq, %2, %21 : vector<1x128xi32>
    %cst_8 = arith.constant 0.000000e+00 : f32
    %23 = vector.broadcast %cst_8 : f32 to vector<1x128xf32>
    %24 = arith.select %22, %23, %20 : vector<1x128xi1>, vector<1x128xf32>
    %c3_i32_9 = arith.constant 3 : i32
    %25 = vector.broadcast %c3_i32_9 : i32 to vector<1x128xi32>
    %26 = arith.cmpi eq, %2, %25 : vector<1x128xi32>
    %cst_10 = arith.constant 0.000000e+00 : f32
    %27 = vector.broadcast %cst_10 : f32 to vector<1x128xf32>
    %28 = arith.select %26, %27, %24 : vector<1x128xi1>, vector<1x128xf32>
    %cst_11 = arith.constant 0.143982917 : f32
    %29 = vector.broadcast %cst_11 : f32 to vector<1x128xf32>
    %c1_i32_12 = arith.constant 1 : i32
    %30 = vector.broadcast %c1_i32_12 : i32 to vector<1x128xi32>
    %31 = arith.cmpi eq, %2, %30 : vector<1x128xi32>
    %cst_13 = arith.constant 0.000000e+00 : f32
    %32 = vector.broadcast %cst_13 : f32 to vector<1x128xf32>
    %33 = arith.select %31, %32, %29 : vector<1x128xi1>, vector<1x128xf32>
    %c2_i32_14 = arith.constant 2 : i32
    %34 = vector.broadcast %c2_i32_14 : i32 to vector<1x128xi32>
    %35 = arith.cmpi eq, %2, %34 : vector<1x128xi32>
    %cst_15 = arith.constant 0.000000e+00 : f32
    %36 = vector.broadcast %cst_15 : f32 to vector<1x128xf32>
    %37 = arith.select %35, %36, %33 : vector<1x128xi1>, vector<1x128xf32>
    %c3_i32_16 = arith.constant 3 : i32
    %38 = vector.broadcast %c3_i32_16 : i32 to vector<1x128xi32>
    %39 = arith.cmpi eq, %2, %38 : vector<1x128xi32>
    %cst_17 = arith.constant 0.000000e+00 : f32
    %40 = vector.broadcast %cst_17 : f32 to vector<1x128xf32>
    %41 = arith.select %39, %40, %37 : vector<1x128xi1>, vector<1x128xf32>
    %cst_18 = arith.constant 4.000000e+00 : f32
    %42 = vector.broadcast %cst_18 : f32 to vector<1x128xf32>
    %c1_i32_19 = arith.constant 1 : i32
    %43 = vector.broadcast %c1_i32_19 : i32 to vector<1x128xi32>
    %44 = arith.cmpi eq, %2, %43 : vector<1x128xi32>
    %cst_20 = arith.constant 2.000000e+00 : f32
    %45 = vector.broadcast %cst_20 : f32 to vector<1x128xf32>
    %46 = arith.select %44, %45, %42 : vector<1x128xi1>, vector<1x128xf32>
    %c2_i32_21 = arith.constant 2 : i32
    %47 = vector.broadcast %c2_i32_21 : i32 to vector<1x128xi32>
    %48 = arith.cmpi eq, %2, %47 : vector<1x128xi32>
    %cst_22 = arith.constant 2.000000e+00 : f32
    %49 = vector.broadcast %cst_22 : f32 to vector<1x128xf32>
    %50 = arith.select %48, %49, %46 : vector<1x128xi1>, vector<1x128xf32>
    %c3_i32_23 = arith.constant 3 : i32
    %51 = vector.broadcast %c3_i32_23 : i32 to vector<1x128xi32>
    %52 = arith.cmpi eq, %2, %51 : vector<1x128xi32>
    %cst_24 = arith.constant 2.000000e+00 : f32
    %53 = vector.broadcast %cst_24 : f32 to vector<1x128xf32>
    %54 = arith.select %52, %53, %50 : vector<1x128xi1>, vector<1x128xf32>
    %cst_25 = arith.constant 2.500000e-01 : f32
    %55 = vector.broadcast %cst_25 : f32 to vector<1x128xf32>
    %c1_i32_26 = arith.constant 1 : i32
    %56 = vector.broadcast %c1_i32_26 : i32 to vector<1x128xi32>
    %57 = arith.cmpi eq, %2, %56 : vector<1x128xi32>
    %cst_27 = arith.constant 5.000000e-01 : f32
    %58 = vector.broadcast %cst_27 : f32 to vector<1x128xf32>
    %59 = arith.select %57, %58, %55 : vector<1x128xi1>, vector<1x128xf32>
    %c2_i32_28 = arith.constant 2 : i32
    %60 = vector.broadcast %c2_i32_28 : i32 to vector<1x128xi32>
    %61 = arith.cmpi eq, %2, %60 : vector<1x128xi32>
    %cst_29 = arith.constant 5.000000e-01 : f32
    %62 = vector.broadcast %cst_29 : f32 to vector<1x128xf32>
    %63 = arith.select %61, %62, %59 : vector<1x128xi1>, vector<1x128xf32>
    %c3_i32_30 = arith.constant 3 : i32
    %64 = vector.broadcast %c3_i32_30 : i32 to vector<1x128xi32>
    %65 = arith.cmpi eq, %2, %64 : vector<1x128xi32>
    %cst_31 = arith.constant 5.000000e-01 : f32
    %66 = vector.broadcast %cst_31 : f32 to vector<1x128xf32>
    %67 = arith.select %65, %66, %63 : vector<1x128xi1>, vector<1x128xf32>
    %c0 = arith.constant 0 : index
    %c0_32 = arith.constant 0 : index
    %68 = vector.load %arg1[%c0, %c0_32] : memref<1x128xf32, #tpu.memory_space<vmem>>, vector<1x128xf32>
    %69 = arith.addf %68, %41 : vector<1x128xf32>
    %70 = math.tanh %69 : vector<1x128xf32>
    %71 = arith.mulf %70, %15 : vector<1x128xf32>
    %72 = arith.subf %71, %28 : vector<1x128xf32>
    %73 = math.roundeven %72 : vector<1x128xf32>
    %74 = arith.mulf %73, %67 : vector<1x128xf32>
    %c0_33 = arith.constant 0 : index
    %c0_34 = arith.constant 0 : index
    %75 = vector.load %arg2[%c0_33, %c0_34] : memref<1x128xf32, #tpu.memory_space<vmem>>, vector<1x128xf32>
    tpu.vector_store %arg2[%c0_33, %c0_34], %74 {strides = array<i32>} : memref<1x128xf32, #tpu.memory_space<vmem>>, vector<1x128xf32>,
    %76 = tpu.iota {dimensions = array<i32: 0>} : vector<128x32xi32>
    %77 = tpu.iota {dimensions = array<i32: 1>} : vector<128x32xi32>
    %c3_i32_35 = arith.constant 3 : i32
    %78 = vector.broadcast %c3_i32_35 : i32 to vector<128x32xi32>
    %79 = arith.andi %76, %78 : vector<128x32xi32>
    %cst_36 = arith.constant 1.000000e+00 : f32
    %80 = vector.broadcast %cst_36 : f32 to vector<128x32xf32>
    %c1_i32_37 = arith.constant 1 : i32
    %81 = vector.broadcast %c1_i32_37 : i32 to vector<128x32xi32>
    %82 = arith.cmpi eq, %79, %81 : vector<128x32xi32>
    %cst_38 = arith.constant 8.000000e+00 : f32
    %83 = vector.broadcast %cst_38 : f32 to vector<128x32xf32>
    %84 = arith.select %82, %83, %80 : vector<128x32xi1>, vector<128x32xf32>
    %c2_i32_39 = arith.constant 2 : i32
    %85 = vector.broadcast %c2_i32_39 : i32 to vector<128x32xi32>
    %86 = arith.cmpi eq, %79, %85 : vector<128x32xi32>
    %cst_40 = arith.constant 4.000000e+01 : f32
    %87 = vector.broadcast %cst_40 : f32 to vector<128x32xf32>
    %88 = arith.select %86, %87, %84 : vector<128x32xi1>, vector<128x32xf32>
    %c3_i32_41 = arith.constant 3 : i32
    %89 = vector.broadcast %c3_i32_41 : i32 to vector<128x32xi32>
    %90 = arith.cmpi eq, %79, %89 : vector<128x32xi32>
    %cst_42 = arith.constant 2.000000e+02 : f32
    %91 = vector.broadcast %cst_42 : f32 to vector<128x32xf32>
    %92 = arith.select %90, %91, %88 : vector<128x32xi1>, vector<128x32xf32>
    %c2_i32_43 = arith.constant 2 : i32
    %93 = vector.broadcast %c2_i32_43 : i32 to vector<128x32xi32>
    %94 = arith.shrsi %76, %93 : vector<128x32xi32>
    %95 = arith.cmpi eq, %94, %77 : vector<128x32xi32>
    %cst_44 = arith.constant 0.000000e+00 : f32
    %96 = vector.broadcast %cst_44 : f32 to vector<128x32xf32>
    %97 = arith.select %95, %92, %96 : vector<128x32xi1>, vector<128x32xf32>
    %98 = arith.addf %73, %54 : vector<1x128xf32>
    %cst_45 = arith.constant dense<0.000000e+00> : vector<1x32xf32>
    %99 = tpu.matmul %98, %97, %cst_45 {dimension_numbers = #tpu.dot_dimension_numbers<[1], [0], [0], [1], [0, 0, 1, 1], [], []>} : vector<1x128xf32>, vector<128x32xf32>, vector<1x32xf32> -> vector<1x32xf32>
    %100 = arith.fptosi %99 : vector<1x32xf32> to vector<1x32xi32>
    %c0_46 = arith.constant 0 : index
    %c0_47 = arith.constant 0 : index
    %101 = vector.load %arg3[%c0_46, %c0_47] : memref<1x32xi32, #tpu.memory_space<vmem>>, vector<1x32xi32>
    tpu.vector_store %arg3[%c0_46, %c0_47], %100 {strides = array<i32>} : memref<1x32xi32, #tpu.memory_space<vmem>>, vector<1x32xi32>,
    return
  }
  func.func @transform_0(%arg0: i32) -> (i32, i32) {
    %c0_i32 = arith.constant 0 : i32
    %c0_i32_0 = arith.constant 0 : i32
    return %arg0, %c0_i32 : i32, i32
  }
  func.func @transform_1(%arg0: i32) -> (i32, i32) {
    %c0_i32 = arith.constant 0 : i32
    %c0_i32_0 = arith.constant 0 : i32
    return %arg0, %c0_i32 : i32, i32
  }
  func.func @transform_2(%arg0: i32) -> (i32, i32) {
    %c0_i32 = arith.constant 0 : i32
    %c0_i32_0 = arith.constant 0 : i32
    return %arg0, %c0_i32 : i32, i32
  }
}

</mosaic_0001>

<llo_original>
// kernel: fsq_forward.1
$region0: #{fsq_forward.1}
  #allocation0 [shape = 'u32[]', space=smem, size = 0x4, offset = 0x4, fixed_abs, tag = 'smem constant byte address 0x4 - core index']
  #allocation1 [shape = 'u32[144,128]{1,0:T(1,128)}', space=vmem, size = 0x12000, scoped, tag = 'internal scratch']
  %s0 = inlined_call_operand.vmem [shape: f32[1,128], index: 0, kind: input, shape index: {}]
  %s1 = inlined_call_operand.vmem [shape: f32[1,128], index: 1, kind: output, shape index: {0}]
  %s2 = inlined_call_operand.vmem [shape: s32[1,32], index: 2, kind: output, shape index: {1}]
  %3 = xla_tuple %s1, %s2
  %s4 = sld [smem:[#allocation0]]
  $region22: #{fsq_forward.1} parent=0
    _
  %s6 = ssub.s32 1, %s4
  %s7 = scalar_select 0, %s6, %s4
  // Predicated region
  $region2: #{fsq_forward.1} parent=0 // pred_check
    _
  $region3: #{fsq_forward.1} parent=0 // pred_check_branch
    %9 = sbr.rel (0) target = $region5
  $region4: #{fsq_forward.1} parent=0 // pred_region
    _
  $region5: #{fsq_forward.1} parent=0 // pred_fallthru
    _
  %v10 = vlaneseq
  %v11 = vand.u32 %v10, 127
  %v12 = vand.u32 %v11, 3
  %vm13 = vcmp.eq.s32.totalorder %v12, 1
  %v14 = vsel %vm13, 1.998, 3.4965
  %vm15 = vcmp.eq.s32.totalorder %v12, 2
  %v16 = vsel %vm15, 1.998, %v14
  %vm17 = vcmp.eq.s32.totalorder %v12, 3
  %v18 = vsel %vm17, 1.998, %v16
  %v19 = vsel %vm13, 0.0, 0.5
  %v20 = vsel %vm15, 0.0, %v19
  %v21 = vsel %vm17, 0.0, %v20
  %v22 = vsel %vm13, 0.0, 0.14398292
  %v23 = vsel %vm15, 0.0, %v22
  %v24 = vsel %vm17, 0.0, %v23
  %v25 = vsel %vm13, 2.0, 4.0
  %v26 = vsel %vm15, 2.0, %v25
  %v27 = vsel %vm17, 2.0, %v26
  %v28 = vsel %vm13, 0.5, 0.25
  %v29 = vsel %vm15, 0.5, %v28
  %v30 = vsel %vm17, 0.5, %v29
  %v31 = vld [vmem:[%s0] sm:$0x1]
  %v32 = vadd.f32 %v31, %v24
  %v33 = vtanh.pop %v32
  %v34 = vmul.f32 %v33, %v18
  %v35 = vsub.f32 %v34, %v21
  %v36 = vround.ne.pseudo %v35
  %v37 = vmul.f32 %v36, %v30
  %38 = vst [vmem:[%s1] sm:$0x1] %v37
  %v39 = vlaneseq
  %v40 = vshrl.u32 %v39, 7
  %v41 = vadd.s32 %v40, 8
  %v42 = vadd.s32 %v40, 16
  %v43 = vadd.s32 %v40, 24
  %v44 = vadd.s32 %v40, 32
  %v45 = vadd.s32 %v40, 40
  %v46 = vadd.s32 %v40, 48
  %v47 = vadd.s32 %v40, 56
  %v48 = vadd.s32 %v40, 64
  %v49 = vadd.s32 %v40, 72
  %v50 = vadd.s32 %v40, 80
  %v51 = vadd.s32 %v40, 88
  %v52 = vadd.s32 %v40, 96
  %v53 = vadd.s32 %v40, 104
  %v54 = vadd.s32 %v40, 112
  %v55 = vadd.s32 %v40, 120
  %v56 = vand.u32 %v40, 3
  %v57 = vand.u32 %v41, 3
  %v58 = vand.u32 %v42, 3
  %v59 = vand.u32 %v43, 3
  %v60 = vand.u32 %v44, 3
  %v61 = vand.u32 %v45, 3
  %v62 = vand.u32 %v46, 3
  %v63 = vand.u32 %v47, 3
  %v64 = vand.u32 %v48, 3
  %v65 = vand.u32 %v49, 3
  %v66 = vand.u32 %v50, 3
  %v67 = vand.u32 %v51, 3
  %v68 = vand.u32 %v52, 3
  %v69 = vand.u32 %v53, 3
  %v70 = vand.u32 %v54, 3
  %v71 = vand.u32 %v55, 3
  %vm72 = vcmp.eq.s32.totalorder %v56, 1
  %vm73 = vcmp.eq.s32.totalorder %v57, 1
  %vm74 = vcmp.eq.s32.totalorder %v58, 1
  %vm75 = vcmp.eq.s32.totalorder %v59, 1
  %vm76 = vcmp.eq.s32.totalorder %v60, 1
  %vm77 = vcmp.eq.s32.totalorder %v61, 1
  %vm78 = vcmp.eq.s32.totalorder %v62, 1
  %vm79 = vcmp.eq.s32.totalorder %v63, 1
  %vm80 = vcmp.eq.s32.totalorder %v64, 1
  %vm81 = vcmp.eq.s32.totalorder %v65, 1
  %vm82 = vcmp.eq.s32.totalorder %v66, 1
  %vm83 = vcmp.eq.s32.totalorder %v67, 1
  %vm84 = vcmp.eq.s32.totalorder %v68, 1
  %vm85 = vcmp.eq.s32.totalorder %v69, 1
  %vm86 = vcmp.eq.s32.totalorder %v70, 1
  %vm87 = vcmp.eq.s32.totalorder %v71, 1
  %v88 = vsel %vm72, 8.0, 1.0
  %v89 = vsel %vm73, 8.0, 1.0
  %v90 = vsel %vm74, 8.0, 1.0
  %v91 = vsel %vm75, 8.0, 1.0
  %v92 = vsel %vm76, 8.0, 1.0
  %v93 = vsel %vm77, 8.0, 1.0
  %v94 = vsel %vm78, 8.0, 1.0
  %v95 = vsel %vm79, 8.0, 1.0
  %v96 = vsel %vm80, 8.0, 1.0
  %v97 = vsel %vm81, 8.0, 1.0
  %v98 = vsel %vm82, 8.0, 1.0
  %v99 = vsel %vm83, 8.0, 1.0
  %v100 = vsel %vm84, 8.0, 1.0
  %v101 = vsel %vm85, 8.0, 1.0
  %v102 = vsel %vm86, 8.0, 1.0
  %v103 = vsel %vm87, 8.0, 1.0
  %vm104 = vcmp.eq.s32.totalorder %v56, 2
  %vm105 = vcmp.eq.s32.totalorder %v57, 2
  %vm106 = vcmp.eq.s32.totalorder %v58, 2
  %vm107 = vcmp.eq.s32.totalorder %v59, 2
  %vm108 = vcmp.eq.s32.totalorder %v60, 2
  %vm109 = vcmp.eq.s32.totalorder %v61, 2
  %vm110 = vcmp.eq.s32.totalorder %v62, 2
  %vm111 = vcmp.eq.s32.totalorder %v63, 2
  %vm112 = vcmp.eq.s32.totalorder %v64, 2
  %vm113 = vcmp.eq.s32.totalorder %v65, 2
  %vm114 = vcmp.eq.s32.totalorder %v66, 2
  %vm115 = vcmp.eq.s32.totalorder %v67, 2
  %vm116 = vcmp.eq.s32.totalorder %v68, 2
  %vm117 = vcmp.eq.s32.totalorder %v69, 2
  %vm118 = vcmp.eq.s32.totalorder %v70, 2
  %vm119 = vcmp.eq.s32.totalorder %v71, 2
  %v120 = vsel %vm104, 40.0, %v88
  %v121 = vsel %vm105, 40.0, %v89
  %v122 = vsel %vm106, 40.0, %v90
  %v123 = vsel %vm107, 40.0, %v91
  %v124 = vsel %vm108, 40.0, %v92
  %v125 = vsel %vm109, 40.0, %v93
  %v126 = vsel %vm110, 40.0, %v94
  %v127 = vsel %vm111, 40.0, %v95
  %v128 = vsel %vm112, 40.0, %v96
  %v129 = vsel %vm113, 40.0, %v97
  %v130 = vsel %vm114, 40.0, %v98
  %v131 = vsel %vm115, 40.0, %v99
  %v132 = vsel %vm116, 40.0, %v100
  %v133 = vsel %vm117, 40.0, %v101
  %v134 = vsel %vm118, 40.0, %v102
  %v135 = vsel %vm119, 40.0, %v103
  %vm136 = vcmp.eq.s32.totalorder %v56, 3
  %vm137 = vcmp.eq.s32.totalorder %v57, 3
  %vm138 = vcmp.eq.s32.totalorder %v58, 3
  %vm139 = vcmp.eq.s32.totalorder %v59, 3
  %vm140 = vcmp.eq.s32.totalorder %v60, 3
  %vm141 = vcmp.eq.s32.totalorder %v61, 3
  %vm142 = vcmp.eq.s32.totalorder %v62, 3
  %vm143 = vcmp.eq.s32.totalorder %v63, 3
  %vm144 = vcmp.eq.s32.totalorder %v64, 3
  %vm145 = vcmp.eq.s32.totalorder %v65, 3
  %vm146 = vcmp.eq.s32.totalorder %v66, 3
  %vm147 = vcmp.eq.s32.totalorder %v67, 3
  %vm148 = vcmp.eq.s32.totalorder %v68, 3
  %vm149 = vcmp.eq.s32.totalorder %v69, 3
  %vm150 = vcmp.eq.s32.totalorder %v70, 3
  %vm151 = vcmp.eq.s32.totalorder %v71, 3
  %v152 = vsel %vm136, 200.0, %v120
  %v153 = vsel %vm137, 200.0, %v121
  %v154 = vsel %vm138, 200.0, %v122
  %v155 = vsel %vm139, 200.0, %v123
  %v156 = vsel %vm140, 200.0, %v124
  %v157 = vsel %vm141, 200.0, %v125
  %v158 = vsel %vm142, 200.0, %v126
  %v159 = vsel %vm143, 200.0, %v127
  %v160 = vsel %vm144, 200.0, %v128
  %v161 = vsel %vm145, 200.0, %v129
  %v162 = vsel %vm146, 200.0, %v130
  %v163 = vsel %vm147, 200.0, %v131
  %v164 = vsel %vm148, 200.0, %v132
  %v165 = vsel %vm149, 200.0, %v133
  %v166 = vsel %vm150, 200.0, %v134
  %v167 = vsel %vm151, 200.0, %v135
  %v168 = vshra.s32 %v40, 2
  %v169 = vshra.s32 %v41, 2
  %v170 = vshra.s32 %v42, 2
  %v171 = vshra.s32 %v43, 2
  %v172 = vshra.s32 %v44, 2
  %v173 = vshra.s32 %v45, 2
  %v174 = vshra.s32 %v46, 2
  %v175 = vshra.s32 %v47, 2
  %v176 = vshra.s32 %v48, 2
  %v177 = vshra.s32 %v49, 2
  %v178 = vshra.s32 %v50, 2
  %v179 = vshra.s32 %v51, 2
  %v180 = vshra.s32 %v52, 2
  %v181 = vshra.s32 %v53, 2
  %v182 = vshra.s32 %v54, 2
  %v183 = vshra.s32 %v55, 2
  %vm184 = vcmp.eq.s32.totalorder %v168, %v11
  %vm185 = vcmp.eq.s32.totalorder %v169, %v11
  %vm186 = vcmp.eq.s32.totalorder %v170, %v11
  %vm187 = vcmp.eq.s32.totalorder %v171, %v11
  %vm188 = vcmp.eq.s32.totalorder %v172, %v11
  %vm189 = vcmp.eq.s32.totalorder %v173, %v11
  %vm190 = vcmp.eq.s32.totalorder %v174, %v11
  %vm191 = vcmp.eq.s32.totalorder %v175, %v11
  %vm192 = vcmp.eq.s32.totalorder %v176, %v11
  %vm193 = vcmp.eq.s32.totalorder %v177, %v11
  %vm194 = vcmp.eq.s32.totalorder %v178, %v11
  %vm195 = vcmp.eq.s32.totalorder %v179, %v11
  %vm196 = vcmp.eq.s32.totalorder %v180, %v11
  %vm197 = vcmp.eq.s32.totalorder %v181, %v11
  %vm198 = vcmp.eq.s32.totalorder %v182, %v11
  %vm199 = vcmp.eq.s32.totalorder %v183, %v11
  %v200 = vsel %vm184, %v152, 0.0
  %v201 = vsel %vm185, %v153, 0.0
  %v202 = vsel %vm186, %v154, 0.0
  %v203 = vsel %vm187, %v155, 0.0
  %v204 = vsel %vm188, %v156, 0.0
  %v205 = vsel %vm189, %v157, 0.0
  %v206 = vsel %vm190, %v158, 0.0
  %v207 = vsel %vm191, %v159, 0.0
  %v208 = vsel %vm192, %v160, 0.0
  %v209 = vsel %vm193, %v161, 0.0
  %v210 = vsel %vm194, %v162, 0.0
  %v211 = vsel %vm195, %v163, 0.0
  %v212 = vsel %vm196, %v164, 0.0
  %v213 = vsel %vm197, %v165, 0.0
  %v214 = vsel %vm198, %v166, 0.0
  %v215 = vsel %vm199, %v167, 0.0
  %v216 = vadd.f32 %v36, %v27
  %217 = vmatprep.subr.mxu0 0.0
  %218 = vmatpush1.msra.mxu0 %v200
  %219 = vmatprep.subr.mxu0 0.0
  %220 = vmatpush1.msra.mxu0 %v201
  %221 = vmatprep.subr.mxu0 0.0
  %222 = vmatpush1.msra.mxu0 %v202
  %223 = vmatprep.subr.mxu0 0.0
  %224 = vmatpush1.msra.mxu0 %v203
  %225 = vmatprep.subr.mxu0 0.0
  %226 = vmatpush1.msra.mxu0 %v204
  %227 = vmatprep.subr.mxu0 0.0
  %228 = vmatpush1.msra.mxu0 %v205
  %229 = vmatprep.subr.mxu0 0.0
  %230 = vmatpush1.msra.mxu0 %v206
  %231 = vmatprep.subr.mxu0 0.0
  %232 = vmatpush1.msra.mxu0 %v207
  %233 = vmatprep.subr.mxu0 0.0
  %234 = vmatpush1.msra.mxu0 %v208
  %235 = vmatprep.subr.mxu0 0.0
  %236 = vmatpush1.msra.mxu0 %v209
  %237 = vmatprep.subr.mxu0 0.0
  %238 = vmatpush1.msra.mxu0 %v210
  %239 = vmatprep.subr.mxu0 0.0
  %240 = vmatpush1.msra.mxu0 %v211
  %241 = vmatprep.subr.mxu0 0.0
  %242 = vmatpush1.msra.mxu0 %v212
  %243 = vmatprep.subr.mxu0 0.0
  %244 = vmatpush1.msra.mxu0 %v213
  %245 = vmatprep.subr.mxu0 0.0
  %246 = vmatpush1.msra.mxu0 %v214
  %247 = vmatprep.subr.mxu0 0.0
  %248 = vmatpush1.msra.mxu0 %v215
  %249 = vmatprep.subr.mxu0 0.0
  %250 = vmatpush1.msra.mxu0 0.0
  %251 = vmatprep.subr.mxu0 0.0
  %252 = vmatpush1.msra.mxu0 0.0
  %253 = vmatprep.subr.mxu0 0.0
  %254 = vmatpush1.msra.mxu0 0.0
  %255 = vmatprep.subr.mxu0 0.0
  %256 = vmatpush1.msra.mxu0 0.0
  %257 = vmatprep.subr.mxu0 0.0
  %258 = vmatpush1.msra.mxu0 0.0
  %259 = vmatprep.subr.mxu0 0.0
  %260 = vmatpush1.msra.mxu0 0.0
  %261 = vmatprep.subr.mxu0 0.0
  %262 = vmatpush1.msra.mxu0 0.0
  %263 = vmatprep.subr.mxu0 0.0
  %264 = vmatpush1.msra.mxu0 0.0
  %265 = vmatprep.subr.mxu0 0.0
  %266 = vmatpush1.msra.mxu0 0.0
  %267 = vmatprep.subr.mxu0 0.0
  %268 = vmatpush1.msra.mxu0 0.0
  %269 = vmatprep.subr.mxu0 0.0
  %270 = vmatpush1.msra.mxu0 0.0
  %271 = vmatprep.subr.mxu0 0.0
  %272 = vmatpush1.msra.mxu0 0.0
  %273 = vmatprep.subr.mxu0 0.0
  %274 = vmatpush1.msra.mxu0 0.0
  %275 = vmatprep.subr.mxu0 0.0
  %276 = vmatpush1.msra.mxu0 0.0
  %277 = vmatprep.subr.mxu0 0.0
  %278 = vmatpush1.msra.mxu0 0.0
  %279 = vmatprep.subr.mxu0 0.0
  %280 = vmatpush1.msra.mxu0 0.0
  %281 = vmatprep.mubr.f32.mxu0 0.0
  %282 = vmatmul.mubr.f32.gmra.mrb[0].mxu0 %v216
  %v283 = vpop.f32.mrb[0].mxu0
  %v284 = vadd.f32 0.0, %v283
  %v285 = vpop.f32.mrb[0].mxu0
  %286 = vdwg.mxu0
  %v287 = vcvt.f32.s32.to.zero.pseudo %v284
  %vm288 = vcmask 253952
  %289 = vst.msk [vmem:[%s2] sm:$0x1] %vm288, %v287
  // Predicated region
  $region6: #{fsq_forward.1} parent=0 // pred_check
    _
  $region7: #{fsq_forward.1} parent=0 // pred_check_branch
    %291 = sbr.rel (0) target = $region9
  $region8: #{fsq_forward.1} parent=0 // pred_region
    _
  $region9: #{fsq_forward.1} parent=0 // pred_fallthru
    _
  // Predicated region
  $region10: #{fsq_forward.1} parent=0 // pred_check
    _
  $region11: #{fsq_forward.1} parent=0 // pred_check_branch
    %293 = sbr.rel (0) target = $region13
  $region12: #{fsq_forward.1} parent=0 // pred_region
    _
  $region13: #{fsq_forward.1} parent=0 // pred_fallthru
    _
  // Predicated region
  $region14: #{fsq_forward.1} parent=0 // pred_check
    _
  $region15: #{fsq_forward.1} parent=0 // pred_check_branch
    %295 = sbr.rel (0) target = $region17
  $region16: #{fsq_forward.1} parent=0 // pred_region
    _
  $region17: #{fsq_forward.1} parent=0 // pred_fallthru
    _
  // Predicated region
  $region18: #{fsq_forward.1} parent=0 // pred_check
    _
  $region19: #{fsq_forward.1} parent=0 // pred_check_branch
    %297 = sbr.rel (0) target = $region21
  $region20: #{fsq_forward.1} parent=0 // pred_region
    _
  $region21: #{fsq_forward.1} parent=0 // pred_fallthru
    _

</llo_original>
